<compile_context>
chip_gen: v7x
topology: tpu7x:2x2x1
jax: 0.10.0
libtpu: 0.0.40
codegen_flags: <defaults>
</compile_context>

<pallas_src>
import functools

import jax
import jax.numpy as jnp
from jax.experimental import pallas as pl
from jax.experimental.pallas import tpu as pltpu

_LANE = 128
_SUB = 16  # sublane alignment safe for both f32 (8) and bf16 (16) packing


def _round_up(x, m):
    return ((x + m - 1) // m) * m


def _pick_vmem_limit(required_bytes):
    """Scoped-VMEM limit: at least 32 MiB, at most physical capacity minus headroom."""
    try:
        cap = int(pltpu.get_tpu_info().vmem_capacity_bytes)
    except Exception:
        cap = 64 * 1024 * 1024  # conservative (v7x per-TC)
    limit = max(int(required_bytes), 32 * 1024 * 1024)
    return int(min(limit, cap - 16 * 1024 * 1024))


def _fused_adapter_gcn_kernel(a_ref, p_ref, x_ref, wf_ref, w2_ref, wc_ref,
                              bh_ref, bc_ref, out_ref):
    """Fused adapter + 2-layer GCN + mean-pool + classifier (single VMEM block).

    a_ref  : [N_pad, N_pad]  bf16   symmetric-normalized adjacency (padded rows/cols 0)
    p_ref  : [G_pad, N_pad]  bf16   mean-pool matrix (rows are 1/count masks)
    x_ref  : [N_pad, F_pad]  bf16   node features (zero padded)
    wf_ref : [F_pad, H_pad]  bf16   Wa @ W1 (adapter folded into layer 1)
    w2_ref : [H_pad, H_pad]  bf16
    wc_ref : [H_pad, C_pad]  bf16
    bh_ref : [8, H_pad]      f32    row 0: ba@W1, row 1: b1, row 2: b2
    bc_ref : [8, C_pad]      f32    row 0: bc
    out_ref: [G_pad, C_pad]  f32
    """
    f32 = jnp.float32
    bf16 = jnp.bfloat16

    A = a_ref[...]
    P = p_ref[...]
    X = x_ref[...]

    b_inner = bh_ref[0:1, :]
    b1 = bh_ref[1:2, :]
    b2 = bh_ref[2:3, :]
    bc = bc_ref[0:1, :]

    # Layer 1 with the adapter folded in (exact algebra):
    #   relu(A @ ((X Wa + ba) W1) + b1) == relu(A @ (X (Wa W1) + (ba W1)) + b1)
    xw = (jnp.dot(X, wf_ref[...], preferred_element_type=f32) + b_inner).astype(bf16)
    h1 = jnp.maximum(
        jnp.dot(A, xw, preferred_element_type=f32) + b1, 0.0).astype(bf16)

    # Layer 2: relu(A @ H1 @ W2 + b2)
    m2 = jnp.dot(A, h1, preferred_element_type=f32).astype(bf16)
    h2 = jnp.maximum(
        jnp.dot(m2, w2_ref[...], preferred_element_type=f32) + b2, 0.0).astype(bf16)

    # Global mean pool, then classifier (lane-dense f32 store).
    pooled = jnp.dot(P, h2, preferred_element_type=f32).astype(bf16)
    out_ref[...] = jnp.dot(pooled, wc_ref[...], preferred_element_type=f32) + bc


@functools.partial(jax.jit, static_argnames=("num_graphs",))
def model_with_adapter_forward(x, edge_index, batch, params, *, num_graphs):
    """x: [N, F] f32, edge_index: [2, E] int32, batch: [N] int32, num_graphs static."""
    N, F = x.shape
    wa, ba, w1, b1, w2, b2, wc, bc = params
    H = w1.shape[0]
    C = wc.shape[1]
    G = num_graphs

    # Per-dimension lane-dense padding (no single pd=max(...)).
    n_pad = _round_up(N, _LANE)
    f_pad = _round_up(F, _LANE)
    h_pad = _round_up(H, _LANE)
    c_pad = _round_up(C, _LANE)
    g_pad = _round_up(G, _SUB)

    # ---- glue: dense symmetric-normalized adjacency, built AT padded size ----
    src, dst = edge_index[0], edge_index[1]
    adj = jnp.zeros((n_pad, n_pad), jnp.float32).at[dst, src].add(1.0)
    idx = jnp.arange(N, dtype=jnp.int32)
    adj = adj.at[idx, idx].add(1.0)                       # self loops, first N only
    deg = jnp.sum(adj, axis=1)                            # padded rows -> deg 0
    d_inv_sqrt = jnp.where(deg > 0, jax.lax.rsqrt(jnp.maximum(deg, 1e-12)), 0.0)
    a_pad = (d_inv_sqrt[:, None] * adj * d_inv_sqrt[None, :]).astype(jnp.bfloat16)

    # ---- glue: per-graph mean-pooling matrix, built AT padded size ----
    batch_pad = jnp.full((n_pad,), -1, jnp.int32).at[:N].set(batch)
    onehot = (batch_pad[None, :]
              == jnp.arange(g_pad, dtype=jnp.int32)[:, None]).astype(jnp.float32)
    counts = jnp.sum(onehot, axis=1, keepdims=True)
    p_pad = (onehot / jnp.maximum(counts, 1.0)).astype(jnp.bfloat16)

    # ---- node features ----
    x_pad = jnp.zeros((n_pad, f_pad), jnp.bfloat16).at[:N, :F].set(
        x.astype(jnp.bfloat16))

    # ---- weights: adapter folded into layer 1, each padded to its own dims ----
    w_fused = wa @ w1            # [F, H]
    b_inner = ba @ w1            # [1, H]
    wf_pad = jnp.zeros((f_pad, h_pad), jnp.bfloat16).at[:F, :H].set(
        w_fused.astype(jnp.bfloat16))
    w2_pad = jnp.zeros((h_pad, h_pad), jnp.bfloat16).at[:H, :H].set(
        w2.astype(jnp.bfloat16))
    wc_pad = jnp.zeros((h_pad, c_pad), jnp.bfloat16).at[:H, :C].set(
        wc.astype(jnp.bfloat16))

    bh_pack = jnp.zeros((8, h_pad), jnp.float32)
    bh_pack = bh_pack.at[0, :H].set(b_inner[0])
    bh_pack = bh_pack.at[1, :H].set(b1[0])
    bh_pack = bh_pack.at[2, :H].set(b2[0])
    bc_pack = jnp.zeros((8, c_pad), jnp.float32).at[0, :C].set(bc[0])

    # Advisory cost estimate for XLA scheduling around the custom call.
    flops = 2 * (
        n_pad * f_pad * h_pad          # X @ W_fused
        + n_pad * n_pad * h_pad        # A @ xw
        + n_pad * n_pad * h_pad        # A @ h1
        + n_pad * h_pad * h_pad        # m2 @ W2
        + g_pad * n_pad * h_pad        # P @ h2
        + g_pad * h_pad * c_pad        # pooled @ Wc
    )
    bytes_accessed = (
        2 * (a_pad.size + p_pad.size + x_pad.size
             + wf_pad.size + w2_pad.size + wc_pad.size)
        + 4 * (bh_pack.size + bc_pack.size + g_pad * c_pad))

    # VMEM need: operands + f32/bf16 [N_pad, H_pad] intermediates, with headroom.
    vmem_req = (
        a_pad.size * 2 + p_pad.size * 2 + x_pad.size * 2
        + (wf_pad.size + w2_pad.size + wc_pad.size) * 2
        + (bh_pack.size + bc_pack.size) * 4
        + g_pad * c_pad * 4
        + 6 * n_pad * h_pad * 4)
    vmem_limit = _pick_vmem_limit(vmem_req * 2)

    out = pl.pallas_call(
        _fused_adapter_gcn_kernel,
        out_shape=jax.ShapeDtypeStruct((g_pad, c_pad), jnp.float32),
        in_specs=[pl.BlockSpec(memory_space=pltpu.MemorySpace.VMEM)] * 8,
        out_specs=pl.BlockSpec(memory_space=pltpu.MemorySpace.VMEM),
        cost_estimate=pl.CostEstimate(
            flops=flops, transcendentals=0, bytes_accessed=bytes_accessed),
        compiler_params=pltpu.CompilerParams(vmem_limit_bytes=vmem_limit),
    )(a_pad, p_pad, x_pad, wf_pad, w2_pad, wc_pad, bh_pack, bc_pack)

    return out[:G, :C]


def _reference_forward(x, edge_index, batch, params, num_graphs):
    """Pure-JAX f32 reference of adapter -> 2-layer GCN -> mean pool -> classifier."""
    N = x.shape[0]
    G = num_graphs
    wa, ba, w1, b1, w2, b2, wc, bc = params
    src, dst = edge_index[0], edge_index[1]
    adj = jnp.zeros((N, N), jnp.float32).at[dst, src].add(1.0)
    adj = adj + jnp.eye(N, dtype=jnp.float32)
    deg = jnp.sum(adj, axis=1)
    d_inv_sqrt = jnp.where(deg > 0, 1.0 / jnp.sqrt(deg), 0.0)
    a_norm = d_inv_sqrt[:, None] * adj * d_inv_sqrt[None, :]
    onehot = (batch[None, :] == jnp.arange(G, dtype=batch.dtype)[:, None]).astype(jnp.float32)
    p_mat = onehot / jnp.maximum(jnp.sum(onehot, axis=1, keepdims=True), 1.0)

    xa = x @ wa + ba
    h1 = jnp.maximum(a_norm @ xa @ w1 + b1, 0.0)
    h2 = jnp.maximum(a_norm @ h1 @ w2 + b2, 0.0)
    return (p_mat @ h2) @ wc + bc


def init_params(key, f_in, hidden, n_classes):
    ks = jax.random.split(key, 8)

    def lin(kw, kb, fan_in, fan_out):
        scale = 1.0 / jnp.sqrt(jnp.float32(fan_in))
        w = jax.random.normal(kw, (fan_in, fan_out), jnp.float32) * scale
        b = jax.random.normal(kb, (1, fan_out), jnp.float32) * 0.1
        return w, b

    wa, ba = lin(ks[0], ks[1], f_in, hidden)
    w1, b1 = lin(ks[2], ks[3], hidden, hidden)
    w2, b2 = lin(ks[4], ks[5], hidden, hidden)
    wc, bc = lin(ks[6], ks[7], hidden, n_classes)
    return (wa, ba, w1, b1, w2, b2, wc, bc)


if __name__ == "__main__":
    # small shapes: N=16 nodes, F=8 input features, H=32 hidden, C=4 classes, G=2 graphs
    N, F, H, C, G = 16, 8, 32, 4, 2
    key = jax.random.PRNGKey(0)
    k_x, k_p = jax.random.split(key)

    x = jax.random.normal(k_x, (N, F), jnp.float32)

    # two graphs of 8 nodes each, ring edges within each graph (both directions)
    half = N // G

    def ring_edges(offset, n):
        s = jnp.arange(n, dtype=jnp.int32) + offset
        d = (jnp.arange(n, dtype=jnp.int32) + 1) % n + offset
        return jnp.stack([jnp.concatenate([s, d]), jnp.concatenate([d, s])], axis=0)

    edge_index = jnp.concatenate([ring_edges(0, half), ring_edges(half, half)], axis=1)
    batch = jnp.concatenate(
        [jnp.zeros((half,), jnp.int32), jnp.ones((half,), jnp.int32)])

    params = init_params(k_p, F, H, C)

    out = model_with_adapter_forward(x, edge_index, batch, params, num_graphs=G)
    jax.block_until_ready(out)

    assert out.shape == (G, C) and out.dtype == jnp.float32

    ref = _reference_forward(x, edge_index, batch, params, G)
    max_err = float(jnp.max(jnp.abs(out - ref)))
    assert max_err < 0.15, f"kernel vs f32 reference mismatch: {max_err}"

    # TODO(synk): adversarial_loss (gradient-based input perturbation objective) not
    # implemented; forward pass only.
    print("KERNEL_OK")
</pallas_src>

<mosaic_0001>
module attributes {stable_mosaic.version = 11 : i64} {
  func.func private @main(%arg0: i32) attributes {dimension_semantics = [#tpu.dimension_semantics<core_parallel>], iteration_bounds = array<i64: 2>, tpu.core_type = #tpu.core_type<sc_scalar_subcore>, window_params = []} {
    return
  }
}

module attributes {stable_mosaic.version = 11 : i64} {
  func.func private @main(%arg0: i32) attributes {dimension_semantics = [#tpu.dimension_semantics<core_parallel>], iteration_bounds = array<i64: 2>, tpu.core_type = #tpu.core_type<sc_scalar_subcore>, window_params = []} {
    return
  }
}

module attributes {stable_mosaic.version = 11 : i64} {
  func.func @_fused_adapter_gcn_kernel(%arg0: memref<128x128xbf16, #tpu.memory_space<vmem>>, %arg1: memref<16x128xbf16, #tpu.memory_space<vmem>>, %arg2: memref<128x128xbf16, #tpu.memory_space<vmem>>, %arg3: memref<128x128xbf16, #tpu.memory_space<vmem>>, %arg4: memref<128x128xbf16, #tpu.memory_space<vmem>>, %arg5: memref<128x128xbf16, #tpu.memory_space<vmem>>, %arg6: memref<8x128xf32, #tpu.memory_space<vmem>>, %arg7: memref<8x128xf32, #tpu.memory_space<vmem>>, %arg8: memref<16x128xf32, #tpu.memory_space<vmem>>) attributes {dimension_semantics = [], scalar_prefetch = 0 : i64, scratch_operands = 0 : i64, tpu.core_type = #tpu.core_type<tc>} {
    %c0 = arith.constant 0 : index
    %c0_0 = arith.constant 0 : index
    %0 = vector.load %arg0[%c0, %c0_0] : memref<128x128xbf16, #tpu.memory_space<vmem>>, vector<128x128xbf16>
    %c0_1 = arith.constant 0 : index
    %c0_2 = arith.constant 0 : index
    %1 = vector.load %arg1[%c0_1, %c0_2] : memref<16x128xbf16, #tpu.memory_space<vmem>>, vector<16x128xbf16>
    %c0_3 = arith.constant 0 : index
    %c0_4 = arith.constant 0 : index
    %2 = vector.load %arg2[%c0_3, %c0_4] : memref<128x128xbf16, #tpu.memory_space<vmem>>, vector<128x128xbf16>
    %c0_5 = arith.constant 0 : index
    %c0_6 = arith.constant 0 : index
    %3 = vector.load %arg6[%c0_5, %c0_6] : memref<8x128xf32, #tpu.memory_space<vmem>>, vector<1x128xf32>
    %c1 = arith.constant 1 : index
    %c0_7 = arith.constant 0 : index
    %4 = vector.load %arg6[%c1, %c0_7] : memref<8x128xf32, #tpu.memory_space<vmem>>, vector<1x128xf32>
    %c2 = arith.constant 2 : index
    %c0_8 = arith.constant 0 : index
    %5 = vector.load %arg6[%c2, %c0_8] : memref<8x128xf32, #tpu.memory_space<vmem>>, vector<1x128xf32>
    %c0_9 = arith.constant 0 : index
    %c0_10 = arith.constant 0 : index
    %6 = vector.load %arg7[%c0_9, %c0_10] : memref<8x128xf32, #tpu.memory_space<vmem>>, vector<1x128xf32>
    %c0_11 = arith.constant 0 : index
    %c0_12 = arith.constant 0 : index
    %7 = vector.load %arg3[%c0_11, %c0_12] : memref<128x128xbf16, #tpu.memory_space<vmem>>, vector<128x128xbf16>
    %cst = arith.constant dense<0.000000e+00> : vector<128x128xf32>
    %8 = tpu.matmul %2, %7, %cst {dimension_numbers = #tpu.dot_dimension_numbers<[1], [0], [0], [1], [0, 0, 1, 1], [], []>} : vector<128x128xbf16>, vector<128x128xbf16>, vector<128x128xf32> -> vector<128x128xf32>
    %9 = vector.broadcast %3 : vector<1x128xf32> to vector<128x128xf32>
    %10 = arith.addf %8, %9 : vector<128x128xf32>
    %11 = arith.truncf %10 : vector<128x128xf32> to vector<128x128xbf16>
    %cst_13 = arith.constant dense<0.000000e+00> : vector<128x128xf32>
    %12 = tpu.matmul %0, %11, %cst_13 {dimension_numbers = #tpu.dot_dimension_numbers<[1], [0], [0], [1], [0, 0, 1, 1], [], []>} : vector<128x128xbf16>, vector<128x128xbf16>, vector<128x128xf32> -> vector<128x128xf32>
    %13 = vector.broadcast %4 : vector<1x128xf32> to vector<128x128xf32>
    %14 = arith.addf %12, %13 : vector<128x128xf32>
    %cst_14 = arith.constant 0.000000e+00 : f32
    %15 = vector.broadcast %cst_14 : f32 to vector<128x128xf32>
    %16 = arith.maximumf %14, %15 : vector<128x128xf32>
    %17 = arith.truncf %16 : vector<128x128xf32> to vector<128x128xbf16>
    %cst_15 = arith.constant dense<0.000000e+00> : vector<128x128xf32>
    %18 = tpu.matmul %0, %17, %cst_15 {dimension_numbers = #tpu.dot_dimension_numbers<[1], [0], [0], [1], [0, 0, 1, 1], [], []>} : vector<128x128xbf16>, vector<128x128xbf16>, vector<128x128xf32> -> vector<128x128xf32>
    %19 = arith.truncf %18 : vector<128x128xf32> to vector<128x128xbf16>
    %c0_16 = arith.constant 0 : index
    %c0_17 = arith.constant 0 : index
    %20 = vector.load %arg4[%c0_16, %c0_17] : memref<128x128xbf16, #tpu.memory_space<vmem>>, vector<128x128xbf16>
    %cst_18 = arith.constant dense<0.000000e+00> : vector<128x128xf32>
    %21 = tpu.matmul %19, %20, %cst_18 {dimension_numbers = #tpu.dot_dimension_numbers<[1], [0], [0], [1], [0, 0, 1, 1], [], []>} : vector<128x128xbf16>, vector<128x128xbf16>, vector<128x128xf32> -> vector<128x128xf32>
    %22 = vector.broadcast %5 : vector<1x128xf32> to vector<128x128xf32>
    %23 = arith.addf %21, %22 : vector<128x128xf32>
    %cst_19 = arith.constant 0.000000e+00 : f32
    %24 = vector.broadcast %cst_19 : f32 to vector<128x128xf32>
    %25 = arith.maximumf %23, %24 : vector<128x128xf32>
    %26 = arith.truncf %25 : vector<128x128xf32> to vector<128x128xbf16>
    %cst_20 = arith.constant dense<0.000000e+00> : vector<16x128xf32>
    %27 = tpu.matmul %1, %26, %cst_20 {dimension_numbers = #tpu.dot_dimension_numbers<[1], [0], [0], [1], [0, 0, 1, 1], [], []>} : vector<16x128xbf16>, vector<128x128xbf16>, vector<16x128xf32> -> vector<16x128xf32>
    %28 = arith.truncf %27 : vector<16x128xf32> to vector<16x128xbf16>
    %c0_21 = arith.constant 0 : index
    %c0_22 = arith.constant 0 : index
    %29 = vector.load %arg5[%c0_21, %c0_22] : memref<128x128xbf16, #tpu.memory_space<vmem>>, vector<128x128xbf16>
    %cst_23 = arith.constant dense<0.000000e+00> : vector<16x128xf32>
    %30 = tpu.matmul %28, %29, %cst_23 {dimension_numbers = #tpu.dot_dimension_numbers<[1], [0], [0], [1], [0, 0, 1, 1], [], []>} : vector<16x128xbf16>, vector<128x128xbf16>, vector<16x128xf32> -> vector<16x128xf32>
    %31 = vector.broadcast %6 : vector<1x128xf32> to vector<16x128xf32>
    %32 = arith.addf %30, %31 : vector<16x128xf32>
    %c0_24 = arith.constant 0 : index
    %c0_25 = arith.constant 0 : index
    %33 = vector.load %arg8[%c0_24, %c0_25] : memref<16x128xf32, #tpu.memory_space<vmem>>, vector<16x128xf32>
    tpu.vector_store %arg8[%c0_24, %c0_25], %32 {strides = array<i32>} : memref<16x128xf32, #tpu.memory_space<vmem>>, vector<16x128xf32>,
    return
  }
}

</mosaic_0001>

<llo_original>
// kernel: model_with_adapter_forward.1
$region0: #{model_with_adapter_forward.1}
  #allocation0 [shape = 'u32[]', space=smem, size = 0x4, offset = 0x4, fixed_abs, tag = 'smem constant byte address 0x4 - core index']
  #allocation1 [shape = 'u32[144,128]{1,0:T(1,128)}', space=vmem, size = 0x12000, scoped, tag = 'internal scratch']
  %s0 = inlined_call_operand.vmem [shape: bf16[128,128], index: 0, kind: input, shape index: {}]
  %s1 = inlined_call_operand.vmem [shape: bf16[16,128], index: 1, kind: input, shape index: {}]
  %s2 = inlined_call_operand.vmem [shape: bf16[128,128], index: 2, kind: input, shape index: {}]
  %s3 = inlined_call_operand.vmem [shape: bf16[128,128], index: 3, kind: input, shape index: {}]
  %s4 = inlined_call_operand.vmem [shape: bf16[128,128], index: 4, kind: input, shape index: {}]
  %s5 = inlined_call_operand.vmem [shape: bf16[128,128], index: 5, kind: input, shape index: {}]
  %s6 = inlined_call_operand.vmem [shape: f32[8,128], index: 6, kind: input, shape index: {}]
  %s7 = inlined_call_operand.vmem [shape: f32[8,128], index: 7, kind: input, shape index: {}]
  %s8 = inlined_call_operand.vmem [shape: f32[16,128], index: 8, kind: output, shape index: {}]
  %s9 = sld [smem:[#allocation0]]
  $region42: #{model_with_adapter_forward.1} parent=0
    _
  %s11 = ssub.s32 1, %s9
  %s12 = scalar_select 0, %s11, %s9
  // Predicated region
  $region2: #{model_with_adapter_forward.1} parent=0 // pred_check
    _
  $region3: #{model_with_adapter_forward.1} parent=0 // pred_check_branch
    %14 = sbr.rel (0) target = $region5
  $region4: #{model_with_adapter_forward.1} parent=0 // pred_region
    _
  $region5: #{model_with_adapter_forward.1} parent=0 // pred_fallthru
    _
  // Predicated region
  $region6: #{model_with_adapter_forward.1} parent=0 // pred_check
    _
  $region7: #{model_with_adapter_forward.1} parent=0 // pred_check_branch
    %16 = sbr.rel (0) target = $region9
  $region8: #{model_with_adapter_forward.1} parent=0 // pred_region
    _
  $region9: #{model_with_adapter_forward.1} parent=0 // pred_fallthru
    _
  // Predicated region
  $region10: #{model_with_adapter_forward.1} parent=0 // pred_check
    _
  $region11: #{model_with_adapter_forward.1} parent=0 // pred_check_branch
    %18 = sbr.rel (0) target = $region13
  $region12: #{model_with_adapter_forward.1} parent=0 // pred_region
    _
  $region13: #{model_with_adapter_forward.1} parent=0 // pred_fallthru
    _
  // Predicated region
  $region14: #{model_with_adapter_forward.1} parent=0 // pred_check
    _
  $region15: #{model_with_adapter_forward.1} parent=0 // pred_check_branch
    %20 = sbr.rel (0) target = $region17
  $region16: #{model_with_adapter_forward.1} parent=0 // pred_region
    _
  $region17: #{model_with_adapter_forward.1} parent=0 // pred_fallthru
    _
  // Predicated region
  $region18: #{model_with_adapter_forward.1} parent=0 // pred_check
    _
  $region19: #{model_with_adapter_forward.1} parent=0 // pred_check_branch
    %22 = sbr.rel (0) target = $region21
  $region20: #{model_with_adapter_forward.1} parent=0 // pred_region
    _
  $region21: #{model_with_adapter_forward.1} parent=0 // pred_fallthru
    _
  // Predicated region
  $region22: #{model_with_adapter_forward.1} parent=0 // pred_check
    _
  $region23: #{model_with_adapter_forward.1} parent=0 // pred_check_branch
    %24 = sbr.rel (0) target = $region25
  $region24: #{model_with_adapter_forward.1} parent=0 // pred_region
    _
  $region25: #{model_with_adapter_forward.1} parent=0 // pred_fallthru
    _
  // Predicated region
  $region26: #{model_with_adapter_forward.1} parent=0 // pred_check
    _
  $region27: #{model_with_adapter_forward.1} parent=0 // pred_check_branch
    %26 = sbr.rel (0) target = $region29
  $region28: #{model_with_adapter_forward.1} parent=0 // pred_region
    _
  $region29: #{model_with_adapter_forward.1} parent=0 // pred_fallthru
    _
  // Predicated region
  $region30: #{model_with_adapter_forward.1} parent=0 // pred_check
    _
  $region31: #{model_with_adapter_forward.1} parent=0 // pred_check_branch
    %28 = sbr.rel (0) target = $region33
  $region32: #{model_with_adapter_forward.1} parent=0 // pred_region
    _
  $region33: #{model_with_adapter_forward.1} parent=0 // pred_fallthru
    _
  %v30 = vld [vmem:[%s0] sm:$0xf]
  %v31 = vld [vmem:[%s0 + $0x4] sm:$0xf]
  %v32 = vld [vmem:[%s0 + $0x8] sm:$0xf]
  %v33 = vld [vmem:[%s0 + $0xc] sm:$0xf]
  %v34 = vld [vmem:[%s0 + $0x10] sm:$0xf]
  %v35 = vld [vmem:[%s0 + $0x14] sm:$0xf]
  %v36 = vld [vmem:[%s0 + $0x18] sm:$0xf]
  %v37 = vld [vmem:[%s0 + $0x1c] sm:$0xf]
  %v38 = vld [vmem:[%s0 + $0x20] sm:$0xf]
  %v39 = vld [vmem:[%s0 + $0x24] sm:$0xf]
  %v40 = vld [vmem:[%s0 + $0x28] sm:$0xf]
  %v41 = vld [vmem:[%s0 + $0x2c] sm:$0xf]
  %v42 = vld [vmem:[%s0 + $0x30] sm:$0xf]
  %v43 = vld [vmem:[%s0 + $0x34] sm:$0xf]
  %v44 = vld [vmem:[%s0 + $0x38] sm:$0xf]
  %v45 = vld [vmem:[%s0 + $0x3c] sm:$0xf]
  %v46 = vld [vmem:[%s1] sm:$0xf]
  %v47 = vld [vmem:[%s1 + $0x4] sm:$0xf]
  %v48 = vld [vmem:[%s2] sm:$0xf]
  %v49 = vld [vmem:[%s2 + $0x4] sm:$0xf]
  %v50 = vld [vmem:[%s2 + $0x8] sm:$0xf]
  %v51 = vld [vmem:[%s2 + $0xc] sm:$0xf]
  %v52 = vld [vmem:[%s2 + $0x10] sm:$0xf]
  %v53 = vld [vmem:[%s2 + $0x14] sm:$0xf]
  %v54 = vld [vmem:[%s2 + $0x18] sm:$0xf]
  %v55 = vld [vmem:[%s2 + $0x1c] sm:$0xf]
  %v56 = vld [vmem:[%s2 + $0x20] sm:$0xf]
  %v57 = vld [vmem:[%s2 + $0x24] sm:$0xf]
  %v58 = vld [vmem:[%s2 + $0x28] sm:$0xf]
  %v59 = vld [vmem:[%s2 + $0x2c] sm:$0xf]
  %v60 = vld [vmem:[%s2 + $0x30] sm:$0xf]
  %v61 = vld [vmem:[%s2 + $0x34] sm:$0xf]
  %v62 = vld [vmem:[%s2 + $0x38] sm:$0xf]
  %v63 = vld [vmem:[%s2 + $0x3c] sm:$0xf]
  %v64 = vld [vmem:[%s6] sm:$0x1]
  %v65 = vld [vmem:[%s6 + $0x1] sm:$0x1]
  %v66 = vld [vmem:[%s6 + $0x2] sm:$0x1]
  %v67 = vld [vmem:[%s7] sm:$0x1]
  %v68 = vld [vmem:[%s3] sm:$0xf]
  %v69 = vld [vmem:[%s3 + $0x4] sm:$0xf]
  %v70 = vld [vmem:[%s3 + $0x8] sm:$0xf]
  %v71 = vld [vmem:[%s3 + $0xc] sm:$0xf]
  %v72 = vld [vmem:[%s3 + $0x10] sm:$0xf]
  %v73 = vld [vmem:[%s3 + $0x14] sm:$0xf]
  %v74 = vld [vmem:[%s3 + $0x18] sm:$0xf]
  %v75 = vld [vmem:[%s3 + $0x1c] sm:$0xf]
  %v76 = vld [vmem:[%s3 + $0x20] sm:$0xf]
  %v77 = vld [vmem:[%s3 + $0x24] sm:$0xf]
  %v78 = vld [vmem:[%s3 + $0x28] sm:$0xf]
  %v79 = vld [vmem:[%s3 + $0x2c] sm:$0xf]
  %v80 = vld [vmem:[%s3 + $0x30] sm:$0xf]
  %v81 = vld [vmem:[%s3 + $0x34] sm:$0xf]
  %v82 = vld [vmem:[%s3 + $0x38] sm:$0xf]
  %v83 = vld [vmem:[%s3 + $0x3c] sm:$0xf]
  %v84 = vlaneseq
  %v85 = vshrl.u32 %v84, 7
  %v86 = vsub.s32 0, %v85
  %v87 = vrot.slane %v64, %v86
  %v104 = vunpack.c.l.b16 %v48
  %v105 = vunpack.c.l.b16 %v49
  %v106 = vunpack.c.l.b16 %v50
  %v107 = vunpack.c.l.b16 %v51
  %v108 = vunpack.c.l.b16 %v52
  %v109 = vunpack.c.l.b16 %v53
  %v110 = vunpack.c.l.b16 %v54
  %v111 = vunpack.c.l.b16 %v55
  %v112 = vunpack.c.l.b16 %v56
  %v113 = vunpack.c.l.b16 %v57
  %v114 = vunpack.c.l.b16 %v58
  %v115 = vunpack.c.l.b16 %v59
  %v116 = vunpack.c.l.b16 %v60
  %v117 = vunpack.c.l.b16 %v61
  %v118 = vunpack.c.l.b16 %v62
  %v119 = vunpack.c.l.b16 %v63
  %v120 = vpack.c.b16 %v105, %v104
  %v121 = vpack.c.b16 %v107, %v106
  %v122 = vpack.c.b16 %v109, %v108
  %v123 = vpack.c.b16 %v111, %v110
  %v124 = vpack.c.b16 %v113, %v112
  %v125 = vpack.c.b16 %v115, %v114
  %v126 = vpack.c.b16 %v117, %v116
  %v127 = vpack.c.b16 %v119, %v118
  %v152 = vunpack.c.l.b16 %v68
  %v153 = vunpack.c.l.b16 %v69
  %v154 = vunpack.c.l.b16 %v70
  %v155 = vunpack.c.l.b16 %v71
  %v156 = vunpack.c.l.b16 %v72
  %v157 = vunpack.c.l.b16 %v73
  %v158 = vunpack.c.l.b16 %v74
  %v159 = vunpack.c.l.b16 %v75
  %v160 = vunpack.c.l.b16 %v76
  %v161 = vunpack.c.l.b16 %v77
  %v162 = vunpack.c.l.b16 %v78
  %v163 = vunpack.c.l.b16 %v79
  %v164 = vunpack.c.l.b16 %v80
  %v165 = vunpack.c.l.b16 %v81
  %v166 = vunpack.c.l.b16 %v82
  %v167 = vunpack.c.l.b16 %v83
  %v168 = vpack.c.b16 %v153, %v152
  %v169 = vpack.c.b16 %v155, %v154
  %v170 = vpack.c.b16 %v157, %v156
  %v171 = vpack.c.b16 %v159, %v158
  %v172 = vpack.c.b16 %v161, %v160
  %v173 = vpack.c.b16 %v163, %v162
  %v174 = vpack.c.b16 %v165, %v164
  %v175 = vpack.c.b16 %v167, %v166
  %184 = vmatprep.subr.bf16.mxu0 0
  %185 = vmatpush1.bf16.msra.mxu0 %v168
  %186 = vmatprep.subr.bf16.mxu0 0
  %187 = vmatpush1.bf16.msra.mxu0 %v169
  %188 = vmatprep.subr.bf16.mxu0 0
  %189 = vmatpush1.bf16.msra.mxu0 %v170
  %190 = vmatprep.subr.bf16.mxu0 0
  %191 = vmatpush1.bf16.msra.mxu0 %v171
  %192 = vmatprep.subr.bf16.mxu0 0
  %193 = vmatpush1.bf16.msra.mxu0 %v172
  %194 = vmatprep.subr.bf16.mxu0 0
  %195 = vmatpush1.bf16.msra.mxu0 %v173
  %196 = vmatprep.subr.bf16.mxu0 0
  %197 = vmatpush1.bf16.msra.mxu0 %v174
  %198 = vmatprep.subr.bf16.mxu0 0
  %199 = vmatpush1.bf16.msra.mxu0 %v175
  %200 = vmatprep.subr.bf16.mxu0 0
  %201 = vmatpush1.bf16.msra.mxu0 0
  %202 = vmatprep.subr.bf16.mxu0 0
  %203 = vmatpush1.bf16.msra.mxu0 0
  %204 = vmatprep.subr.bf16.mxu0 0
  %205 = vmatpush1.bf16.msra.mxu0 0
  %206 = vmatprep.subr.bf16.mxu0 0
  %207 = vmatpush1.bf16.msra.mxu0 0
  %208 = vmatprep.subr.bf16.mxu0 0
  %209 = vmatpush1.bf16.msra.mxu0 0
  %210 = vmatprep.subr.bf16.mxu0 0
  %211 = vmatpush1.bf16.msra.mxu0 0
  %212 = vmatprep.subr.bf16.mxu0 0
  %213 = vmatpush1.bf16.msra.mxu0 0
  %214 = vmatprep.subr.bf16.mxu0 0
  %215 = vmatpush1.bf16.msra.mxu0 0
  %216 = vmatprep.mubr.bf16.mxu0 0
  %217 = vmatmul.mubr.bf16.gmra.mrb[0].mxu0 %v120
  %v218 = vpop.f32.mrb[0].mxu0
  %v219 = vadd.f32 %v87, %v218
  %v220 = vpop.f32.mrb[0].mxu0
  %v221 = vpop.f32.mrb[0].mxu0
  %v222 = vadd.f32 %v87, %v221
  %v223 = vpop.f32.mrb[0].mxu0
  %224 = vmatprep.mubr.bf16.mxu0 0
  %225 = vmatmul.mubr.bf16.gmra.mrb[0].mxu0 %v121
  %v226 = vpop.f32.mrb[0].mxu0
  %v227 = vadd.f32 %v87, %v226
  %v228 = vpop.f32.mrb[0].mxu0
  %v229 = vpop.f32.mrb[0].mxu0
  %v230 = vadd.f32 %v87, %v229
  %v231 = vpop.f32.mrb[0].mxu0
  %232 = vmatprep.mubr.bf16.mxu0 0
  %233 = vmatmul.mubr.bf16.gmra.mrb[0].mxu0 %v122
  %v234 = vpop.f32.mrb[0].mxu0
  %v235 = vadd.f32 %v87, %v234
  %v236 = vpop.f32.mrb[0].mxu0
  %v237 = vpop.f32.mrb[0].mxu0
  %v238 = vadd.f32 %v87, %v237
  %v239 = vpop.f32.mrb[0].mxu0
  %240 = vmatprep.mubr.bf16.mxu0 0
  %241 = vmatmul.mubr.bf16.gmra.mrb[0].mxu0 %v123
  %v242 = vpop.f32.mrb[0].mxu0
  %v243 = vadd.f32 %v87, %v242
  %v244 = vpop.f32.mrb[0].mxu0
  %v245 = vpop.f32.mrb[0].mxu0
  %v246 = vadd.f32 %v87, %v245
  %v247 = vpop.f32.mrb[0].mxu0
  %248 = vmatprep.mubr.bf16.mxu0 0
  %249 = vmatmul.mubr.bf16.gmra.mrb[0].mxu0 %v124
  %v250 = vpop.f32.mrb[0].mxu0
  %v251 = vadd.f32 %v87, %v250
  %v252 = vpop.f32.mrb[0].mxu0
  %v253 = vpop.f32.mrb[0].mxu0
  %v254 = vadd.f32 %v87, %v253
  %v255 = vpop.f32.mrb[0].mxu0
  %256 = vmatprep.mubr.bf16.mxu0 0
  %257 = vmatmul.mubr.bf16.gmra.mrb[0].mxu0 %v125
  %v258 = vpop.f32.mrb[0].mxu0
  %v259 = vadd.f32 %v87, %v258
  %v260 = vpop.f32.mrb[0].mxu0
  %v261 = vpop.f32.mrb[0].mxu0
  %v262 = vadd.f32 %v87, %v261
  %v263 = vpop.f32.mrb[0].mxu0
  %264 = vmatprep.mubr.bf16.mxu0 0
  %265 = vmatmul.mubr.bf16.gmra.mrb[0].mxu0 %v126
  %v266 = vpop.f32.mrb[0].mxu0
  %v267 = vadd.f32 %v87, %v266
  %v268 = vpop.f32.mrb[0].mxu0
  %v269 = vpop.f32.mrb[0].mxu0
  %v270 = vadd.f32 %v87, %v269
  %v271 = vpop.f32.mrb[0].mxu0
  %272 = vmatprep.mubr.bf16.mxu0 0
  %273 = vmatmul.mubr.bf16.gmra.mrb[0].mxu0 %v127
  %v274 = vpop.f32.mrb[0].mxu0
  %v275 = vadd.f32 %v87, %v274
  %v276 = vpop.f32.mrb[0].mxu0
  %v277 = vpop.f32.mrb[0].mxu0
  %v278 = vadd.f32 %v87, %v277
  %v279 = vpop.f32.mrb[0].mxu0
  %280 = vdwg.mxu0
  %v281 = vpack.c.bf16 %v222, %v219
  %v282 = vpack.c.bf16 %v230, %v227
  %v283 = vpack.c.bf16 %v238, %v235
  %v284 = vpack.c.bf16 %v246, %v243
  %v285 = vpack.c.bf16 %v254, %v251
  %v286 = vpack.c.bf16 %v262, %v259
  %v287 = vpack.c.bf16 %v270, %v267
  %v288 = vpack.c.bf16 %v278, %v275
  %v289 = vlaneseq
  %v290 = vshrl.u32 %v289, 7
  %v291 = vsub.s32 0, %v290
  %v292 = vrot.slane %v65, %v291
  %v309 = vunpack.c.l.b16 %v30
  %v310 = vunpack.c.l.b16 %v31
  %v311 = vunpack.c.l.b16 %v32
  %v312 = vunpack.c.l.b16 %v33
  %v313 = vunpack.c.l.b16 %v34
  %v314 = vunpack.c.l.b16 %v35
  %v315 = vunpack.c.l.b16 %v36
  %v316 = vunpack.c.l.b16 %v37
  %v317 = vunpack.c.l.b16 %v38
  %v318 = vunpack.c.l.b16 %v39
  %v319 = vunpack.c.l.b16 %v40
  %v320 = vunpack.c.l.b16 %v41
  %v321 = vunpack.c.l.b16 %v42
  %v322 = vunpack.c.l.b16 %v43
  %v323 = vunpack.c.l.b16 %v44
  %v324 = vunpack.c.l.b16 %v45
  %v325 = vpack.c.b16 %v310, %v309
  %v326 = vpack.c.b16 %v312, %v311
  %v327 = vpack.c.b16 %v314, %v313
  %v328 = vpack.c.b16 %v316, %v315
  %v329 = vpack.c.b16 %v318, %v317
  %v330 = vpack.c.b16 %v320, %v319
  %v331 = vpack.c.b16 %v322, %v321
  %v332 = vpack.c.b16 %v324, %v323
  %341 = vmatprep.subr.bf16.mxu0 0
  %342 = vmatpush1.bf16.msra.mxu0 %v281
  %343 = vmatprep.subr.bf16.mxu0 0
  %344 = vmatpush1.bf16.msra.mxu0 %v282
  %345 = vmatprep.subr.bf16.mxu0 0
  %346 = vmatpush1.bf16.msra.mxu0 %v283
  %347 = vmatprep.subr.bf16.mxu0 0
  %348 = vmatpush1.bf16.msra.mxu0 %v284
  %349 = vmatprep.subr.bf16.mxu0 0
  %350 = vmatpush1.bf16.msra.mxu0 %v285
  %351 = vmatprep.subr.bf16.mxu0 0
  %352 = vmatpush1.bf16.msra.mxu0 %v286
  %353 = vmatprep.subr.bf16.mxu0 0
  %354 = vmatpush1.bf16.msra.mxu0 %v287
  %355 = vmatprep.subr.bf16.mxu0 0
  %356 = vmatpush1.bf16.msra.mxu0 %v288
  %357 = vmatprep.subr.bf16.mxu0 0
  %358 = vmatpush1.bf16.msra.mxu0 0
  %359 = vmatprep.subr.bf16.mxu0 0
  %360 = vmatpush1.bf16.msra.mxu0 0
  %361 = vmatprep.subr.bf16.mxu0 0
  %362 = vmatpush1.bf16.msra.mxu0 0
  %363 = vmatprep.subr.bf16.mxu0 0
  %364 = vmatpush1.bf16.msra.mxu0 0
  %365 = vmatprep.subr.bf16.mxu0 0
  %366 = vmatpush1.bf16.msra.mxu0 0
  %367 = vmatprep.subr.bf16.mxu0 0
  %368 = vmatpush1.bf16.msra.mxu0 0
  %369 = vmatprep.subr.bf16.mxu0 0
  %370 = vmatpush1.bf16.msra.mxu0 0
  %371 = vmatprep.subr.bf16.mxu0 0
  %372 = vmatpush1.bf16.msra.mxu0 0
  %373 = vmatprep.mubr.bf16.mxu0 0
  %374 = vmatmul.mubr.bf16.gmra.mrb[0].mxu0 %v325
  %v375 = vpop.f32.mrb[0].mxu0
  %v376 = vadd.f32 %v292, %v375
  %v377 = vpop.f32.mrb[0].mxu0
  %v378 = vpop.f32.mrb[0].mxu0
  %v379 = vadd.f32 %v292, %v378
  %v380 = vpop.f32.mrb[0].mxu0
  %381 = vmatprep.mubr.bf16.mxu0 0
  %382 = vmatmul.mubr.bf16.gmra.mrb[0].mxu0 %v326
  %v383 = vpop.f32.mrb[0].mxu0
  %v384 = vadd.f32 %v292, %v383
  %v385 = vpop.f32.mrb[0].mxu0
  %v386 = vpop.f32.mrb[0].mxu0
  %v387 = vadd.f32 %v292, %v386
  %v388 = vpop.f32.mrb[0].mxu0
  %389 = vmatprep.mubr.bf16.mxu0 0
  %390 = vmatmul.mubr.bf16.gmra.mrb[0].mxu0 %v327
  %v391 = vpop.f32.mrb[0].mxu0
  %v392 = vadd.f32 %v292, %v391
  %v393 = vpop.f32.mrb[0].mxu0
  %v394 = vpop.f32.mrb[0].mxu0
  %v395 = vadd.f32 %v292, %v394
  %v396 = vpop.f32.mrb[0].mxu0
  %397 = vmatprep.mubr.bf16.mxu0 0
  %398 = vmatmul.mubr.bf16.gmra.mrb[0].mxu0 %v328
  %v399 = vpop.f32.mrb[0].mxu0
  %v400 = vadd.f32 %v292, %v399
  %v401 = vpop.f32.mrb[0].mxu0
  %v402 = vpop.f32.mrb[0].mxu0
  %v403 = vadd.f32 %v292, %v402
  %v404 = vpop.f32.mrb[0].mxu0
  %405 = vmatprep.mubr.bf16.mxu0 0
  %406 = vmatmul.mubr.bf16.gmra.mrb[0].mxu0 %v329
  %v407 = vpop.f32.mrb[0].mxu0
  %v408 = vadd.f32 %v292, %v407
  %v409 = vpop.f32.mrb[0].mxu0
  %v410 = vpop.f32.mrb[0].mxu0
  %v411 = vadd.f32 %v292, %v410
  %v412 = vpop.f32.mrb[0].mxu0
  %413 = vmatprep.mubr.bf16.mxu0 0
  %414 = vmatmul.mubr.bf16.gmra.mrb[0].mxu0 %v330
  %v415 = vpop.f32.mrb[0].mxu0
  %v416 = vadd.f32 %v292, %v415
  %v417 = vpop.f32.mrb[0].mxu0
  %v418 = vpop.f32.mrb[0].mxu0
  %v419 = vadd.f32 %v292, %v418
  %v420 = vpop.f32.mrb[0].mxu0
  %421 = vmatprep.mubr.bf16.mxu0 0
  %422 = vmatmul.mubr.bf16.gmra.mrb[0].mxu0 %v331
  %v423 = vpop.f32.mrb[0].mxu0
  %v424 = vadd.f32 %v292, %v423
  %v425 = vpop.f32.mrb[0].mxu0
  %v426 = vpop.f32.mrb[0].mxu0
  %v427 = vadd.f32 %v292, %v426
  %v428 = vpop.f32.mrb[0].mxu0
  %429 = vmatprep.mubr.bf16.mxu0 0
  %430 = vmatmul.mubr.bf16.gmra.mrb[0].mxu0 %v332
  %v431 = vpop.f32.mrb[0].mxu0
  %v432 = vadd.f32 %v292, %v431
  %v433 = vpop.f32.mrb[0].mxu0
  %v434 = vpop.f32.mrb[0].mxu0
  %v435 = vadd.f32 %v292, %v434
  %v436 = vpop.f32.mrb[0].mxu0
  %437 = vdwg.mxu0
  %v438 = vmax.f32 %v376, 0.0
  %v439 = vmax.f32 %v379, 0.0
  %v440 = vmax.f32 %v384, 0.0
  %v441 = vmax.f32 %v387, 0.0
  %v442 = vmax.f32 %v392, 0.0
  %v443 = vmax.f32 %v395, 0.0
  %v444 = vmax.f32 %v400, 0.0
  %v445 = vmax.f32 %v403, 0.0
  %v446 = vmax.f32 %v408, 0.0
  %v447 = vmax.f32 %v411, 0.0
  %v448 = vmax.f32 %v416, 0.0
  %v449 = vmax.f32 %v419, 0.0
  %v450 = vmax.f32 %v424, 0.0
  %v451 = vmax.f32 %v427, 0.0
  %v452 = vmax.f32 %v432, 0.0
  %v453 = vmax.f32 %v435, 0.0
  %v454 = vpack.c.bf16 %v439, %v438
  %v455 = vpack.c.bf16 %v441, %v440
  %v456 = vpack.c.bf16 %v443, %v442
  %v457 = vpack.c.bf16 %v445, %v444
  %v458 = vpack.c.bf16 %v447, %v446
  %v459 = vpack.c.bf16 %v449, %v448
  %v460 = vpack.c.bf16 %v451, %v450
  %v461 = vpack.c.bf16 %v453, %v452
  %462 = vmatprep.subr.bf16.mxu0 0
  %463 = vmatpush1.bf16.msra.mxu0 %v454
  %464 = vmatprep.subr.bf16.mxu0 0
  %465 = vmatpush1.bf16.msra.mxu0 %v455
  %466 = vmatprep.subr.bf16.mxu0 0
  %467 = vmatpush1.bf16.msra.mxu0 %v456
  %468 = vmatprep.subr.bf16.mxu0 0
  %469 = vmatpush1.bf16.msra.mxu0 %v457
  %470 = vmatprep.subr.bf16.mxu0 0
  %471 = vmatpush1.bf16.msra.mxu0 %v458
  %472 = vmatprep.subr.bf16.mxu0 0
  %473 = vmatpush1.bf16.msra.mxu0 %v459
  %474 = vmatprep.subr.bf16.mxu0 0
  %475 = vmatpush1.bf16.msra.mxu0 %v460
  %476 = vmatprep.subr.bf16.mxu0 0
  %477 = vmatpush1.bf16.msra.mxu0 %v461
  %478 = vmatprep.subr.bf16.mxu0 0
  %479 = vmatpush1.bf16.msra.mxu0 0
  %480 = vmatprep.subr.bf16.mxu0 0
  %481 = vmatpush1.bf16.msra.mxu0 0
  %482 = vmatprep.subr.bf16.mxu0 0
  %483 = vmatpush1.bf16.msra.mxu0 0
  %484 = vmatprep.subr.bf16.mxu0 0
  %485 = vmatpush1.bf16.msra.mxu0 0
  %486 = vmatprep.subr.bf16.mxu0 0
  %487 = vmatpush1.bf16.msra.mxu0 0
  %488 = vmatprep.subr.bf16.mxu0 0
  %489 = vmatpush1.bf16.msra.mxu0 0
  %490 = vmatprep.subr.bf16.mxu0 0
  %491 = vmatpush1.bf16.msra.mxu0 0
  %492 = vmatprep.subr.bf16.mxu0 0
  %493 = vmatpush1.bf16.msra.mxu0 0
  %494 = vmatprep.mubr.bf16.mxu0 0
  %495 = vmatmul.mubr.bf16.gmra.mrb[0].mxu0 %v325
  %v496 = vpop.f32.mrb[0].mxu0
  %v497 = vadd.f32 0.0, %v496
  %v498 = vpop.f32.mrb[0].mxu0
  %v499 = vpop.f32.mrb[0].mxu0
  %v500 = vadd.f32 0.0, %v499
  %v501 = vpop.f32.mrb[0].mxu0
  %502 = vmatprep.mubr.bf16.mxu0 0
  %503 = vmatmul.mubr.bf16.gmra.mrb[0].mxu0 %v326
  %v504 = vpop.f32.mrb[0].mxu0
  %v505 = vadd.f32 0.0, %v504
  %v506 = vpop.f32.mrb[0].mxu0
  %v507 = vpop.f32.mrb[0].mxu0
  %v508 = vadd.f32 0.0, %v507
  %v509 = vpop.f32.mrb[0].mxu0
  %510 = vmatprep.mubr.bf16.mxu0 0
  %511 = vmatmul.mubr.bf16.gmra.mrb[0].mxu0 %v327
  %v512 = vpop.f32.mrb[0].mxu0
  %v513 = vadd.f32 0.0, %v512
  %v514 = vpop.f32.mrb[0].mxu0
  %v515 = vpop.f32.mrb[0].mxu0
  %v516 = vadd.f32 0.0, %v515
  %v517 = vpop.f32.mrb[0].mxu0
  %518 = vmatprep.mubr.bf16.mxu0 0
  %519 = vmatmul.mubr.bf16.gmra.mrb[0].mxu0 %v328
  %v520 = vpop.f32.mrb[0].mxu0
  %v521 = vadd.f32 0.0, %v520
  %v522 = vpop.f32.mrb[0].mxu0
  %v523 = vpop.f32.mrb[0].mxu0
  %v524 = vadd.f32 0.0, %v523
  %v525 = vpop.f32.mrb[0].mxu0
  %526 = vmatprep.mubr.bf16.mxu0 0
  %527 = vmatmul.mubr.bf16.gmra.mrb[0].mxu0 %v329
  %v528 = vpop.f32.mrb[0].mxu0
  %v529 = vadd.f32 0.0, %v528
  %v530 = vpop.f32.mrb[0].mxu0
  %v531 = vpop.f32.mrb[0].mxu0
  %v532 = vadd.f32 0.0, %v531
  %v533 = vpop.f32.mrb[0].mxu0
  %534 = vmatprep.mubr.bf16.mxu0 0
  %535 = vmatmul.mubr.bf16.gmra.mrb[0].mxu0 %v330
  %v536 = vpop.f32.mrb[0].mxu0
  %v537 = vadd.f32 0.0, %v536
  %v538 = vpop.f32.mrb[0].mxu0
  %v539 = vpop.f32.mrb[0].mxu0
  %v540 = vadd.f32 0.0, %v539
  %v541 = vpop.f32.mrb[0].mxu0
  %542 = vmatprep.mubr.bf16.mxu0 0
  %543 = vmatmul.mubr.bf16.gmra.mrb[0].mxu0 %v331
  %v544 = vpop.f32.mrb[0].mxu0
  %v545 = vadd.f32 0.0, %v544
  %v546 = vpop.f32.mrb[0].mxu0
  %v547 = vpop.f32.mrb[0].mxu0
  %v548 = vadd.f32 0.0, %v547
  %v549 = vpop.f32.mrb[0].mxu0
  %550 = vmatprep.mubr.bf16.mxu0 0
  %551 = vmatmul.mubr.bf16.gmra.mrb[0].mxu0 %v332
  %v552 = vpop.f32.mrb[0].mxu0
  %v553 = vadd.f32 0.0, %v552
  %v554 = vpop.f32.mrb[0].mxu0
  %v555 = vpop.f32.mrb[0].mxu0
  %v556 = vadd.f32 0.0, %v555
  %v557 = vpop.f32.mrb[0].mxu0
  %558 = vdwg.mxu0
  %v559 = vpack.c.bf16 %v500, %v497
  %v560 = vpack.c.bf16 %v508, %v505
  %v561 = vpack.c.bf16 %v516, %v513
  %v562 = vpack.c.bf16 %v524, %v521
  %v563 = vpack.c.bf16 %v532, %v529
  %v564 = vpack.c.bf16 %v540, %v537
  %v565 = vpack.c.bf16 %v548, %v545
  %v566 = vpack.c.bf16 %v556, %v553
  %v567 = vld [vmem:[%s4] sm:$0xf]
  %v568 = vld [vmem:[%s4 + $0x4] sm:$0xf]
  %v569 = vld [vmem:[%s4 + $0x8] sm:$0xf]
  %v570 = vld [vmem:[%s4 + $0xc] sm:$0xf]
  %v571 = vld [vmem:[%s4 + $0x10] sm:$0xf]
  %v572 = vld [vmem:[%s4 + $0x14] sm:$0xf]
  %v573 = vld [vmem:[%s4 + $0x18] sm:$0xf]
  %v574 = vld [vmem:[%s4 + $0x1c] sm:$0xf]
  %v575 = vld [vmem:[%s4 + $0x20] sm:$0xf]
  %v576 = vld [vmem:[%s4 + $0x24] sm:$0xf]
  %v577 = vld [vmem:[%s4 + $0x28] sm:$0xf]
  %v578 = vld [vmem:[%s4 + $0x2c] sm:$0xf]
  %v579 = vld [vmem:[%s4 + $0x30] sm:$0xf]
  %v580 = vld [vmem:[%s4 + $0x34] sm:$0xf]
  %v581 = vld [vmem:[%s4 + $0x38] sm:$0xf]
  %v582 = vld [vmem:[%s4 + $0x3c] sm:$0xf]
  %v583 = vlaneseq
  %v584 = vshrl.u32 %v583, 7
  %v585 = vsub.s32 0, %v584
  %v586 = vrot.slane %v66, %v585
  %v603 = vunpack.c.l.b16 %v567
  %v604 = vunpack.c.l.b16 %v568
  %v605 = vunpack.c.l.b16 %v569
  %v606 = vunpack.c.l.b16 %v570
  %v607 = vunpack.c.l.b16 %v571
  %v608 = vunpack.c.l.b16 %v572
  %v609 = vunpack.c.l.b16 %v573
  %v610 = vunpack.c.l.b16 %v574
  %v611 = vunpack.c.l.b16 %v575
  %v612 = vunpack.c.l.b16 %v576
  %v613 = vunpack.c.l.b16 %v577
  %v614 = vunpack.c.l.b16 %v578
  %v615 = vunpack.c.l.b16 %v579
  %v616 = vunpack.c.l.b16 %v580
  %v617 = vunpack.c.l.b16 %v581
  %v618 = vunpack.c.l.b16 %v582
  %v619 = vpack.c.b16 %v604, %v603
  %v620 = vpack.c.b16 %v606, %v605
  %v621 = vpack.c.b16 %v608, %v607
  %v622 = vpack.c.b16 %v610, %v609
  %v623 = vpack.c.b16 %v612, %v611
  %v624 = vpack.c.b16 %v614, %v613
  %v625 = vpack.c.b16 %v616, %v615
  %v626 = vpack.c.b16 %v618, %v617
  %635 = vmatprep.subr.bf16.mxu0 0
  %636 = vmatpush1.bf16.msra.mxu0 %v619
  %637 = vmatprep.subr.bf16.mxu0 0
  %638 = vmatpush1.bf16.msra.mxu0 %v620
  %639 = vmatprep.subr.bf16.mxu0 0
  %640 = vmatpush1.bf16.msra.mxu0 %v621
  %641 = vmatprep.subr.bf16.mxu0 0
  %642 = vmatpush1.bf16.msra.mxu0 %v622
  %643 = vmatprep.subr.bf16.mxu0 0
  %644 = vmatpush1.bf16.msra.mxu0 %v623
  %645 = vmatprep.subr.bf16.mxu0 0
  %646 = vmatpush1.bf16.msra.mxu0 %v624
  %647 = vmatprep.subr.bf16.mxu0 0
  %648 = vmatpush1.bf16.msra.mxu0 %v625
  %649 = vmatprep.subr.bf16.mxu0 0
  %650 = vmatpush1.bf16.msra.mxu0 %v626
  %651 = vmatprep.subr.bf16.mxu0 0
  %652 = vmatpush1.bf16.msra.mxu0 0
  %653 = vmatprep.subr.bf16.mxu0 0
  %654 = vmatpush1.bf16.msra.mxu0 0
  %655 = vmatprep.subr.bf16.mxu0 0
  %656 = vmatpush1.bf16.msra.mxu0 0
  %657 = vmatprep.subr.bf16.mxu0 0
  %658 = vmatpush1.bf16.msra.mxu0 0
  %659 = vmatprep.subr.bf16.mxu0 0
  %660 = vmatpush1.bf16.msra.mxu0 0
  %661 = vmatprep.subr.bf16.mxu0 0
  %662 = vmatpush1.bf16.msra.mxu0 0
  %663 = vmatprep.subr.bf16.mxu0 0
  %664 = vmatpush1.bf16.msra.mxu0 0
  %665 = vmatprep.subr.bf16.mxu0 0
  %666 = vmatpush1.bf16.msra.mxu0 0
  %667 = vmatprep.mubr.bf16.mxu0 0
  %668 = vmatmul.mubr.bf16.gmra.mrb[0].mxu0 %v559
  %v669 = vpop.f32.mrb[0].mxu0
  %v670 = vadd.f32 %v586, %v669
  %v671 = vpop.f32.mrb[0].mxu0
  %v672 = vpop.f32.mrb[0].mxu0
  %v673 = vadd.f32 %v586, %v672
  %v674 = vpop.f32.mrb[0].mxu0
  %675 = vmatprep.mubr.bf16.mxu0 0
  %676 = vmatmul.mubr.bf16.gmra.mrb[0].mxu0 %v560
  %v677 = vpop.f32.mrb[0].mxu0
  %v678 = vadd.f32 %v586, %v677
  %v679 = vpop.f32.mrb[0].mxu0
  %v680 = vpop.f32.mrb[0].mxu0
  %v681 = vadd.f32 %v586, %v680
  %v682 = vpop.f32.mrb[0].mxu0
  %683 = vmatprep.mubr.bf16.mxu0 0
  %684 = vmatmul.mubr.bf16.gmra.mrb[0].mxu0 %v561
  %v685 = vpop.f32.mrb[0].mxu0
  %v686 = vadd.f32 %v586, %v685
  %v687 = vpop.f32.mrb[0].mxu0
  %v688 = vpop.f32.mrb[0].mxu0
  %v689 = vadd.f32 %v586, %v688
  %v690 = vpop.f32.mrb[0].mxu0
  %691 = vmatprep.mubr.bf16.mxu0 0
  %692 = vmatmul.mubr.bf16.gmra.mrb[0].mxu0 %v562
  %v693 = vpop.f32.mrb[0].mxu0
  %v694 = vadd.f32 %v586, %v693
  %v695 = vpop.f32.mrb[0].mxu0
  %v696 = vpop.f32.mrb[0].mxu0
  %v697 = vadd.f32 %v586, %v696
  %v698 = vpop.f32.mrb[0].mxu0
  %699 = vmatprep.mubr.bf16.mxu0 0
  %700 = vmatmul.mubr.bf16.gmra.mrb[0].mxu0 %v563
  %v701 = vpop.f32.mrb[0].mxu0
  %v702 = vadd.f32 %v586, %v701
  %v703 = vpop.f32.mrb[0].mxu0
  %v704 = vpop.f32.mrb[0].mxu0
  %v705 = vadd.f32 %v586, %v704
  %v706 = vpop.f32.mrb[0].mxu0
  %707 = vmatprep.mubr.bf16.mxu0 0
  %708 = vmatmul.mubr.bf16.gmra.mrb[0].mxu0 %v564
  %v709 = vpop.f32.mrb[0].mxu0
  %v710 = vadd.f32 %v586, %v709
  %v711 = vpop.f32.mrb[0].mxu0
  %v712 = vpop.f32.mrb[0].mxu0
  %v713 = vadd.f32 %v586, %v712
  %v714 = vpop.f32.mrb[0].mxu0
  %715 = vmatprep.mubr.bf16.mxu0 0
  %716 = vmatmul.mubr.bf16.gmra.mrb[0].mxu0 %v565
  %v717 = vpop.f32.mrb[0].mxu0
  %v718 = vadd.f32 %v586, %v717
  %v719 = vpop.f32.mrb[0].mxu0
  %v720 = vpop.f32.mrb[0].mxu0
  %v721 = vadd.f32 %v586, %v720
  %v722 = vpop.f32.mrb[0].mxu0
  %723 = vmatprep.mubr.bf16.mxu0 0
  %724 = vmatmul.mubr.bf16.gmra.mrb[0].mxu0 %v566
  %v725 = vpop.f32.mrb[0].mxu0
  %v726 = vadd.f32 %v586, %v725
  %v727 = vpop.f32.mrb[0].mxu0
  %v728 = vpop.f32.mrb[0].mxu0
  %v729 = vadd.f32 %v586, %v728
  %v730 = vpop.f32.mrb[0].mxu0
  %731 = vdwg.mxu0
  %v732 = vmax.f32 %v670, 0.0
  %v733 = vmax.f32 %v673, 0.0
  %v734 = vmax.f32 %v678, 0.0
  %v735 = vmax.f32 %v681, 0.0
  %v736 = vmax.f32 %v686, 0.0
  %v737 = vmax.f32 %v689, 0.0
  %v738 = vmax.f32 %v694, 0.0
  %v739 = vmax.f32 %v697, 0.0
  %v740 = vmax.f32 %v702, 0.0
  %v741 = vmax.f32 %v705, 0.0
  %v742 = vmax.f32 %v710, 0.0
  %v743 = vmax.f32 %v713, 0.0
  %v744 = vmax.f32 %v718, 0.0
  %v745 = vmax.f32 %v721, 0.0
  %v746 = vmax.f32 %v726, 0.0
  %v747 = vmax.f32 %v729, 0.0
  %v748 = vpack.c.bf16 %v733, %v732
  %v749 = vpack.c.bf16 %v735, %v734
  %v750 = vpack.c.bf16 %v737, %v736
  %v751 = vpack.c.bf16 %v739, %v738
  %v752 = vpack.c.bf16 %v741, %v740
  %v753 = vpack.c.bf16 %v743, %v742
  %v754 = vpack.c.bf16 %v745, %v744
  %v755 = vpack.c.bf16 %v747, %v746
  %v758 = vunpack.c.l.b16 %v46
  %v759 = vunpack.c.l.b16 %v47
  %v760 = vpack.c.b16 %v759, %v758
  %762 = vmatprep.subr.bf16.mxu0 0
  %763 = vmatpush1.bf16.msra.mxu0 %v748
  %764 = vmatprep.subr.bf16.mxu0 0
  %765 = vmatpush1.bf16.msra.mxu0 %v749
  %766 = vmatprep.subr.bf16.mxu0 0
  %767 = vmatpush1.bf16.msra.mxu0 %v750
  %768 = vmatprep.subr.bf16.mxu0 0
  %769 = vmatpush1.bf16.msra.mxu0 %v751
  %770 = vmatprep.subr.bf16.mxu0 0
  %771 = vmatpush1.bf16.msra.mxu0 %v752
  %772 = vmatprep.subr.bf16.mxu0 0
  %773 = vmatpush1.bf16.msra.mxu0 %v753
  %774 = vmatprep.subr.bf16.mxu0 0
  %775 = vmatpush1.bf16.msra.mxu0 %v754
  %776 = vmatprep.subr.bf16.mxu0 0
  %777 = vmatpush1.bf16.msra.mxu0 %v755
  %778 = vmatprep.subr.bf16.mxu0 0
  %779 = vmatpush1.bf16.msra.mxu0 0
  %780 = vmatprep.subr.bf16.mxu0 0
  %781 = vmatpush1.bf16.msra.mxu0 0
  %782 = vmatprep.subr.bf16.mxu0 0
  %783 = vmatpush1.bf16.msra.mxu0 0
  %784 = vmatprep.subr.bf16.mxu0 0
  %785 = vmatpush1.bf16.msra.mxu0 0
  %786 = vmatprep.subr.bf16.mxu0 0
  %787 = vmatpush1.bf16.msra.mxu0 0
  %788 = vmatprep.subr.bf16.mxu0 0
  %789 = vmatpush1.bf16.msra.mxu0 0
  %790 = vmatprep.subr.bf16.mxu0 0
  %791 = vmatpush1.bf16.msra.mxu0 0
  %792 = vmatprep.subr.bf16.mxu0 0
  %793 = vmatpush1.bf16.msra.mxu0 0
  %794 = vmatprep.mubr.bf16.mxu0 0
  %795 = vmatmul.mubr.bf16.gmra.mrb[0].mxu0 %v760
  %v796 = vpop.f32.mrb[0].mxu0
  %v797 = vadd.f32 0.0, %v796
  %v798 = vpop.f32.mrb[0].mxu0
  %v799 = vpop.f32.mrb[0].mxu0
  %v800 = vadd.f32 0.0, %v799
  %v801 = vpop.f32.mrb[0].mxu0
  %802 = vdwg.mxu0
  %v803 = vpack.c.bf16 %v800, %v797
  %v804 = vld [vmem:[%s5] sm:$0xf]
  %v805 = vld [vmem:[%s5 + $0x4] sm:$0xf]
  %v806 = vld [vmem:[%s5 + $0x8] sm:$0xf]
  %v807 = vld [vmem:[%s5 + $0xc] sm:$0xf]
  %v808 = vld [vmem:[%s5 + $0x10] sm:$0xf]
  %v809 = vld [vmem:[%s5 + $0x14] sm:$0xf]
  %v810 = vld [vmem:[%s5 + $0x18] sm:$0xf]
  %v811 = vld [vmem:[%s5 + $0x1c] sm:$0xf]
  %v812 = vld [vmem:[%s5 + $0x20] sm:$0xf]
  %v813 = vld [vmem:[%s5 + $0x24] sm:$0xf]
  %v814 = vld [vmem:[%s5 + $0x28] sm:$0xf]
  %v815 = vld [vmem:[%s5 + $0x2c] sm:$0xf]
  %v816 = vld [vmem:[%s5 + $0x30] sm:$0xf]
  %v817 = vld [vmem:[%s5 + $0x34] sm:$0xf]
  %v818 = vld [vmem:[%s5 + $0x38] sm:$0xf]
  %v819 = vld [vmem:[%s5 + $0x3c] sm:$0xf]
  %v820 = vlaneseq
  %v821 = vshrl.u32 %v820, 7
  %v822 = vsub.s32 0, %v821
  %v823 = vrot.slane %v67, %v822
  %v840 = vunpack.c.l.b16 %v804
  %v841 = vunpack.c.l.b16 %v805
  %v842 = vunpack.c.l.b16 %v806
  %v843 = vunpack.c.l.b16 %v807
  %v844 = vunpack.c.l.b16 %v808
  %v845 = vunpack.c.l.b16 %v809
  %v846 = vunpack.c.l.b16 %v810
  %v847 = vunpack.c.l.b16 %v811
  %v848 = vunpack.c.l.b16 %v812
  %v849 = vunpack.c.l.b16 %v813
  %v850 = vunpack.c.l.b16 %v814
  %v851 = vunpack.c.l.b16 %v815
  %v852 = vunpack.c.l.b16 %v816
  %v853 = vunpack.c.l.b16 %v817
  %v854 = vunpack.c.l.b16 %v818
  %v855 = vunpack.c.l.b16 %v819
  %v856 = vpack.c.b16 %v841, %v840
  %v857 = vpack.c.b16 %v843, %v842
  %v858 = vpack.c.b16 %v845, %v844
  %v859 = vpack.c.b16 %v847, %v846
  %v860 = vpack.c.b16 %v849, %v848
  %v861 = vpack.c.b16 %v851, %v850
  %v862 = vpack.c.b16 %v853, %v852
  %v863 = vpack.c.b16 %v855, %v854
  %872 = vmatprep.subr.bf16.mxu0 0
  %873 = vmatpush1.bf16.msra.mxu0 %v856
  %874 = vmatprep.subr.bf16.mxu0 0
  %875 = vmatpush1.bf16.msra.mxu0 %v857
  %876 = vmatprep.subr.bf16.mxu0 0
  %877 = vmatpush1.bf16.msra.mxu0 %v858
  %878 = vmatprep.subr.bf16.mxu0 0
  %879 = vmatpush1.bf16.msra.mxu0 %v859
  %880 = vmatprep.subr.bf16.mxu0 0
  %881 = vmatpush1.bf16.msra.mxu0 %v860
  %882 = vmatprep.subr.bf16.mxu0 0
  %883 = vmatpush1.bf16.msra.mxu0 %v861
  %884 = vmatprep.subr.bf16.mxu0 0
  %885 = vmatpush1.bf16.msra.mxu0 %v862
  %886 = vmatprep.subr.bf16.mxu0 0
  %887 = vmatpush1.bf16.msra.mxu0 %v863
  %888 = vmatprep.subr.bf16.mxu0 0
  %889 = vmatpush1.bf16.msra.mxu0 0
  %890 = vmatprep.subr.bf16.mxu0 0
  %891 = vmatpush1.bf16.msra.mxu0 0
  %892 = vmatprep.subr.bf16.mxu0 0
  %893 = vmatpush1.bf16.msra.mxu0 0
  %894 = vmatprep.subr.bf16.mxu0 0
  %895 = vmatpush1.bf16.msra.mxu0 0
  %896 = vmatprep.subr.bf16.mxu0 0
  %897 = vmatpush1.bf16.msra.mxu0 0
  %898 = vmatprep.subr.bf16.mxu0 0
  %899 = vmatpush1.bf16.msra.mxu0 0
  %900 = vmatprep.subr.bf16.mxu0 0
  %901 = vmatpush1.bf16.msra.mxu0 0
  %902 = vmatprep.subr.bf16.mxu0 0
  %903 = vmatpush1.bf16.msra.mxu0 0
  %904 = vmatprep.mubr.bf16.mxu0 0
  %905 = vmatmul.mubr.bf16.gmra.mrb[0].mxu0 %v803
  %v906 = vpop.f32.mrb[0].mxu0
  %v907 = vadd.f32 %v823, %v906
  %v908 = vpop.f32.mrb[0].mxu0
  %v909 = vpop.f32.mrb[0].mxu0
  %v910 = vadd.f32 %v823, %v909
  %v911 = vpop.f32.mrb[0].mxu0
  %912 = vdwg.mxu0
  %913 = vst [vmem:[%s8] sm:$0xff] %v907
  %914 = vst [vmem:[%s8 + $0x8] sm:$0xff] %v910
  // Predicated region
  $region34: #{model_with_adapter_forward.1} parent=0 // pred_check
    _
  $region35: #{model_with_adapter_forward.1} parent=0 // pred_check_branch
    %916 = sbr.rel (0) target = $region37
  $region36: #{model_with_adapter_forward.1} parent=0 // pred_region
    _
  $region37: #{model_with_adapter_forward.1} parent=0 // pred_fallthru
    _
  // Predicated region
  $region38: #{model_with_adapter_forward.1} parent=0 // pred_check
    _
  $region39: #{model_with_adapter_forward.1} parent=0 // pred_check_branch
    %918 = sbr.rel (0) target = $region41
  $region40: #{model_with_adapter_forward.1} parent=0 // pred_region
    _
  $region41: #{model_with_adapter_forward.1} parent=0 // pred_fallthru
    _

</llo_original>
